<compile_context>
chip_gen: v6e
topology: v6e:2x2x1
jax: 0.10.0
libtpu: 0.0.40
codegen_flags: <defaults>
</compile_context>

<pallas_src>
import math

import jax
import jax.numpy as jnp
from jax import lax
from jax.experimental import pallas as pl
from jax.experimental.pallas import tpu as pltpu

_INV_SQRT2 = 1.0 / math.sqrt(2.0)

_LANES = 128
_MAX_TILE_ROWS = 2048   # 2048 * 128 * 4 B = 1 MiB f32 tile
_SMALL_ROWS = 512       # <= 256 KiB f32: single block, overhead-dominated
_MIN_BLOCKS = 8         # enough steps to pipeline + shard across v7x's 2 TCs


def _round_up(x: int, m: int) -> int:
    return -(-x // m) * m


def _gelu_bert_kernel(x_ref, o_ref):
    # 0.5 * x * (1 + erf(x / sqrt(2))) computed in f32, stored in I/O dtype.
    x = x_ref[...].astype(jnp.float32)
    o_ref[...] = (0.5 * x * (1.0 + lax.erf(x * _INV_SQRT2))).astype(o_ref.dtype)


def _choose_tile_rows(rows: int) -> int:
    """Pick a tile row count: <=1 MiB f32, multiple of 16, even block count."""
    if rows <= _SMALL_ROWS:
        return rows  # single full-array block; any row count is legal
    nblk = max(_MIN_BLOCKS, pl.cdiv(rows, _MAX_TILE_ROWS))
    nblk = _round_up(nblk, 2)  # even step count -> balanced v7x megacore split
    tr = min(_MAX_TILE_ROWS, _round_up(pl.cdiv(rows, nblk), 16))
    actual = pl.cdiv(rows, tr)
    if actual > 1 and actual % 2 == 1:
        # 16-rounding knocked the block count odd; try one more block.
        tr2 = min(_MAX_TILE_ROWS, _round_up(pl.cdiv(rows, actual + 1), 16))
        if pl.cdiv(rows, tr2) % 2 == 0:
            tr = tr2
    return tr


def _build_in_spec(tr: int, nblk: int) -> pl.BlockSpec:
    index_map = lambda i: (i, 0)
    if nblk >= 3:
        try:
            # Triple-buffer the input: hides short per-step DMA turnaround.
            return pl.BlockSpec((tr, _LANES), index_map,
                                pipeline_mode=pl.Buffered(3))
        except TypeError:
            pass  # older BlockSpec signature — plain double buffering
    return pl.BlockSpec((tr, _LANES), index_map)


def _gelu_bert_2d(x2d: jax.Array) -> jax.Array:
    """Run the kernel over a (rows, 128) slab with ~1 MiB streaming tiles."""
    rows, lanes = x2d.shape
    tr = _choose_tile_rows(rows)
    nblk = pl.cdiv(rows, tr)

    # Right-sized VMEM cap: (3 in + 2 out) tile buffers in I/O dtype plus f32
    # compute headroom, doubled for margin.  ~8-16 MiB — fits every generation.
    tile_bytes = tr * lanes * x2d.dtype.itemsize
    f32_tile_bytes = tr * lanes * 4
    vmem_limit = min(32 << 20,
                     max(8 << 20, 2 * (5 * tile_bytes + 2 * f32_tile_bytes)))

    return pl.pallas_call(
        _gelu_bert_kernel,
        out_shape=jax.ShapeDtypeStruct((rows, lanes), x2d.dtype),
        grid_spec=pltpu.PrefetchScalarGridSpec(
            num_scalar_prefetch=0,
            grid=(nblk,),
            in_specs=[_build_in_spec(tr, nblk)],
            out_specs=pl.BlockSpec((tr, lanes), lambda i: (i, 0)),
        ),
        compiler_params=pltpu.CompilerParams(
            dimension_semantics=("parallel",),
            vmem_limit_bytes=vmem_limit,
        ),
    )(x2d)


def gelu_bert(x: jax.Array) -> jax.Array:
    """Exact GeLU (BERT variant) computed in a Pallas TPU kernel."""
    orig_shape = x.shape
    n = x.size
    if n == 0:
        return x

    n_main = n - (n % _LANES)

    if n_main == n:
        # Fast path (the common NN-activation case): pure streaming HBM pass.
        out2d = _gelu_bert_2d(x.reshape(n // _LANES, _LANES))
        return out2d.reshape(orig_shape)

    x_flat = x.reshape(-1)
    if n_main == 0:
        # Tiny ragged tensor (< 128 elements): pad to one lane row.
        x2d = jnp.pad(x_flat, (0, _LANES - n)).reshape(1, _LANES)
        return _gelu_bert_2d(x2d).reshape(-1)[:n].reshape(orig_shape)

    # Lane-aligned prefix through the kernel; the <128-element tail in plain
    # JAX — avoids a full-tensor pad + slice round trip through HBM.
    out_main = _gelu_bert_2d(x_flat[:n_main].reshape(-1, _LANES)).reshape(-1)
    tail = x_flat[n_main:].astype(jnp.float32)
    out_tail = (0.5 * tail * (1.0 + lax.erf(tail * _INV_SQRT2))).astype(x.dtype)
    return jnp.concatenate([out_main, out_tail]).reshape(orig_shape)


def _gelu_bert_ref(x):
    # Pure-JAX reference matching the PyTorch module exactly (f32 math).
    xf = x.astype(jnp.float32)
    return (0.5 * xf * (1.0 + lax.erf(xf * _INV_SQRT2))).astype(x.dtype)


if __name__ == "__main__":
    key = jax.random.PRNGKey(0)

    # Small NCHW-like activation tensor (fast path: single full-array block).
    x = jax.random.normal(key, (2, 4, 16, 16), dtype=jnp.float32)
    out = jax.block_until_ready(gelu_bert(x))
    ref = _gelu_bert_ref(x)
    assert out.shape == x.shape and out.dtype == x.dtype
    assert jnp.allclose(out, ref, atol=1e-6, rtol=1e-6), (
        float(jnp.max(jnp.abs(out - ref)))
    )

    # Mid-sized activation: exercises the multi-step pipelined grid (8 blocks).
    x_mid = jax.random.normal(jax.random.PRNGKey(3), (4, 512, 128),
                              dtype=jnp.float32)
    out_mid = jax.block_until_ready(gelu_bert(x_mid))
    ref_mid = _gelu_bert_ref(x_mid)
    assert jnp.allclose(out_mid, ref_mid, atol=1e-6, rtol=1e-6), (
        float(jnp.max(jnp.abs(out_mid - ref_mid)))
    )

    # Tiny odd-sized input (< 128 elements): pad path.
    x_odd = jax.random.normal(jax.random.PRNGKey(1), (3, 5, 7), dtype=jnp.float32)
    out_odd = jax.block_until_ready(gelu_bert(x_odd))
    ref_odd = _gelu_bert_ref(x_odd)
    assert out_odd.shape == x_odd.shape and out_odd.dtype == x_odd.dtype
    assert jnp.allclose(out_odd, ref_odd, atol=1e-6, rtol=1e-6), (
        float(jnp.max(jnp.abs(out_odd - ref_odd)))
    )

    # Larger ragged input: kernel handles the lane-aligned prefix, JAX the tail.
    x_rag = jax.random.normal(jax.random.PRNGKey(4), (5, 131), dtype=jnp.float32)
    out_rag = jax.block_until_ready(gelu_bert(x_rag))
    ref_rag = _gelu_bert_ref(x_rag)
    assert out_rag.shape == x_rag.shape and out_rag.dtype == x_rag.dtype
    assert jnp.allclose(out_rag, ref_rag, atol=1e-6, rtol=1e-6), (
        float(jnp.max(jnp.abs(out_rag - ref_rag)))
    )

    # bf16 input: I/O stays bf16, math runs in f32 inside the kernel.
    x_bf = jax.random.normal(jax.random.PRNGKey(2), (2, 8, 128), dtype=jnp.bfloat16)
    out_bf = jax.block_until_ready(gelu_bert(x_bf))
    ref_bf = _gelu_bert_ref(x_bf)
    assert out_bf.shape == x_bf.shape and out_bf.dtype == x_bf.dtype
    assert jnp.allclose(out_bf.astype(jnp.float32), ref_bf.astype(jnp.float32),
                        atol=2e-2, rtol=2e-2)

    print("KERNEL_OK")
</pallas_src>

<mosaic_0001>
module attributes {stable_mosaic.version = 11 : i64} {
  func.func @_gelu_bert_kernel(%arg0: i32, %arg1: memref<16x128xf32, #tpu.memory_space<vmem>>, %arg2: memref<16x128xf32, #tpu.memory_space<vmem>>) attributes {dimension_semantics = [#tpu.dimension_semantics<parallel>], iteration_bounds = array<i64: 1>, scalar_prefetch = 0 : i64, scratch_operands = 0 : i64, tpu.core_type = #tpu.core_type<tc>, window_params = [{transform_indices = @transform_0, window_bounds = array<i64: 16, 128>}, {transform_indices = @transform_1, window_bounds = array<i64: 16, 128>}]} {
    %c0 = arith.constant 0 : index
    %c0_0 = arith.constant 0 : index
    %0 = vector.load %arg1[%c0, %c0_0] : memref<16x128xf32, #tpu.memory_space<vmem>>, vector<16x128xf32>
    %cst = arith.constant 5.000000e-01 : f32
    %1 = vector.broadcast %cst : f32 to vector<16x128xf32>
    %2 = arith.mulf %1, %0 : vector<16x128xf32>
    %cst_1 = arith.constant 0.707106769 : f32
    %3 = vector.broadcast %cst_1 : f32 to vector<16x128xf32>
    %4 = arith.mulf %0, %3 : vector<16x128xf32>
    %5 = math.erf %4 : vector<16x128xf32>
    %cst_2 = arith.constant 1.000000e+00 : f32
    %6 = vector.broadcast %cst_2 : f32 to vector<16x128xf32>
    %7 = arith.addf %6, %5 : vector<16x128xf32>
    %8 = arith.mulf %2, %7 : vector<16x128xf32>
    %c0_3 = arith.constant 0 : index
    %c0_4 = arith.constant 0 : index
    %9 = vector.load %arg2[%c0_3, %c0_4] : memref<16x128xf32, #tpu.memory_space<vmem>>, vector<16x128xf32>
    tpu.vector_store %arg2[%c0_3, %c0_4], %8 {strides = array<i32>} : memref<16x128xf32, #tpu.memory_space<vmem>>, vector<16x128xf32>,
    return
  }
  func.func @transform_0(%arg0: i32) -> (i32, i32) {
    %c0_i32 = arith.constant 0 : i32
    %c0_i32_0 = arith.constant 0 : i32
    return %arg0, %c0_i32 : i32, i32
  }
  func.func @transform_1(%arg0: i32) -> (i32, i32) {
    %c0_i32 = arith.constant 0 : i32
    %c0_i32_0 = arith.constant 0 : i32
    return %arg0, %c0_i32 : i32, i32
  }
}

</mosaic_0001>

<llo_original>
// kernel: tpu_custom_call.1
$region0: #{tpu_custom_call.1}
  #allocation0 [shape = 'u32[]', space=smem, size = 0x4, offset = 0x4, fixed_abs, tag = 'smem constant byte address 0x4 - core index']
  #allocation1 [shape = 'u32[144,128]{1,0:T(1,128)}', space=vmem, size = 0x12000, scoped, tag = 'internal scratch']
  %s0 = inlined_call_operand.hbm [shape: f32[16,128], index: 0, kind: input, shape index: {}]
  %s1 = inlined_call_operand.hbm [shape: f32[16,128], index: 1, kind: output, shape index: {}]
  %s2 = sld [smem:[#allocation0]]
  $region18: #{tpu_custom_call.1} parent=0
    _
  %s4 = ssub.s32 1, %s2
  %s5 = scalar_select 0, %s4, %s2
  $region1: #{tpu_custom_call.1} parent=0
    #allocation2 [shape = 'u8[8192]{0}', space=vmem, size = 0x2000, scoped, tag = 'input window, operand 0, single buffered']
    #allocation3 [shape = 's32[1]{0}', space=sflag, size = 0x4, scoped, tag = 'scoped memory for tpu_custom_call.1']
    #allocation4 [shape = 's32[1]{0}', space=sflag, size = 0x4, scoped, tag = 'scoped memory for tpu_custom_call.1']
    #allocation5 [shape = 'u8[8192]{0}', space=vmem, size = 0x2000, scoped, tag = 'output window, operand 0, single buffered']
    %6 = vsyncpa [#allocation3], 0
    %7 = vsyncpa [#allocation4], 0
    // Predicated region
    $region2: #{tpu_custom_call.1} parent=1 // pred_check
      _
    $region3: #{tpu_custom_call.1} parent=1 // pred_check_branch
      %9 = sbr.rel (0) target = $region5
    $region4: #{tpu_custom_call.1} parent=1 // pred_region
      %s11 = ssub.s32 256, 256
      %12 = vsyncadd [#allocation3], %s11
      %s13 = sshll.u32 [#allocation2], 4
      %s14 = int_to_ptr.vmem [resolvable:$true] %s13
      %19 = dma.hbm_to_vmem [thread:$0]  %s0, 256, %s14, [#allocation3], 128, 128, 8
    $region5: #{tpu_custom_call.1} parent=1 // pred_fallthru
      _
    // Predicated region
    $region6: #{tpu_custom_call.1} parent=1 // pred_check
      _
    $region7: #{tpu_custom_call.1} parent=1 // pred_check_branch
      %21 = sbr.rel (0) target = $region9
    $region8: #{tpu_custom_call.1} parent=1 // pred_region
      %22 = dma.done [#allocation3], 256
    $region9: #{tpu_custom_call.1} parent=1 // pred_fallthru
      _
    %v23 = vld [vmem:[#allocation2] sm:$0xff]
    %v24 = vld [vmem:[#allocation2 + $0x8] sm:$0xff]
    %v25 = vmul.f32 %v23, 0.5
    %v26 = vmul.f32 %v24, 0.5
    %v27 = vmul.f32 %v23, 0.70710677
    %v28 = vmul.f32 %v24, 0.70710677
    %v29 = verf.f32.pop %v27
    %v30 = verf.f32.pop %v28
    %v31 = vadd.f32 %v29, 1.0
    %v32 = vadd.f32 %v30, 1.0
    %v33 = vmul.f32 %v25, %v31
    %v34 = vmul.f32 %v26, %v32
    %35 = vst [vmem:[#allocation5] sm:$0xff] %v33
    %36 = vst [vmem:[#allocation5 + $0x8] sm:$0xff] %v34
    // Predicated region
    $region10: #{tpu_custom_call.1} parent=1 // pred_check
      _
    $region11: #{tpu_custom_call.1} parent=1 // pred_check_branch
      %38 = sbr.rel (0) target = $region13
    $region12: #{tpu_custom_call.1} parent=1 // pred_region
      %s40 = ssub.s32 256, 256
      %41 = vsyncadd [#allocation4], %s40
      %s42 = sshll.u32 [#allocation5], 4
      %s43 = int_to_ptr.vmem [resolvable:$true] %s42
      %48 = dma.vmem_to_hbm [thread:$0]  %s43, 256, %s1, [#allocation4], 128, 128, 8
    $region13: #{tpu_custom_call.1} parent=1 // pred_fallthru
      _
    // Predicated region
    $region14: #{tpu_custom_call.1} parent=1 // pred_check
      _
    $region15: #{tpu_custom_call.1} parent=1 // pred_check_branch
      %50 = sbr.rel (0) target = $region17
    $region16: #{tpu_custom_call.1} parent=1 // pred_region
      %51 = dma.done [#allocation4], 256
    $region17: #{tpu_custom_call.1} parent=1 // pred_fallthru
      _
    %52 = vsyncpa [#allocation3], 1
    %53 = vsyncpa [#allocation4], 1

</llo_original>
